<compile_context>
chip_gen: v7x
topology: tpu7x:2x2x1
jax: 0.10.0
libtpu: 0.0.40
codegen_flags: <defaults>
</compile_context>

<pallas_src>
import math

import jax
import jax.numpy as jnp
from jax import lax
from jax.experimental import pallas as pl
from jax.experimental.pallas import tpu as pltpu


# ---------------------------------------------------------------------------
# Kernel 1: batched input-only projection (parallel over row tiles).
#   gc = x @ W_all                      (M, K*F)
#   g1 = gc @ Wg_gc + b                 (M, 4F)
# ---------------------------------------------------------------------------
def proj_kernel(x_ref, wall_ref, wggc_ref, b_ref, gc_ref, g1_ref):
    gc = jnp.dot(x_ref[...], wall_ref[...], preferred_element_type=jnp.float32)
    gc_ref[...] = gc
    g1_ref[...] = (jnp.dot(gc, wggc_ref[...], preferred_element_type=jnp.float32)
                   + b_ref[...])


def gclstm_project(x2d, w_all, wg_gc, b_gates):
    """x2d: (M, F) with M = T*B. Returns gc (M, K*F) and g1 (M, 4F)."""
    M, Fs = x2d.shape
    KF = w_all.shape[1]
    G = wg_gc.shape[1]

    # Row tile: whole thing for small M, otherwise 256-row tiles (multiple of 8).
    tm = M if M <= 256 else 256
    grid_m = pl.cdiv(M, tm)
    const = lambda i: (0, 0)

    grid_spec = pltpu.PrefetchScalarGridSpec(
        num_scalar_prefetch=0,
        grid=(grid_m,),
        in_specs=[
            pl.BlockSpec((tm, Fs), lambda i: (i, 0)),    # x rows, streamed per tile
            pl.BlockSpec(w_all.shape, const),            # fused graph-conv weights
            pl.BlockSpec(wg_gc.shape, const),            # gate weights (gc part)
            pl.BlockSpec(b_gates.shape, const),          # gate bias
        ],
        out_specs=(
            pl.BlockSpec((tm, KF), lambda i: (i, 0)),    # gc
            pl.BlockSpec((tm, G), lambda i: (i, 0)),     # g1 = gc @ Wg_gc + b
        ),
    )
    out_shapes = (
        jax.ShapeDtypeStruct((M, KF), jnp.float32),
        jax.ShapeDtypeStruct((M, G), jnp.float32),
    )
    return pl.pallas_call(
        proj_kernel,
        out_shape=out_shapes,
        grid_spec=grid_spec,
        compiler_params=pltpu.CompilerParams(
            dimension_semantics=("parallel",)),          # shardable across TCs (v7x)
    )(x2d, w_all, wg_gc, b_gates)


# ---------------------------------------------------------------------------
# Kernel 2: the serial recurrence, all T steps inside ONE kernel invocation.
#   gates_t = g1_t + h @ Wg_h
#   c <- sigm(f)*(c*nv) + sigm(i)*tanh(Cg);  h <- sigm(o)*tanh(c)
# ---------------------------------------------------------------------------
def recur_kernel(g1_ref, h0_ref, c0_ref, wgh_ref, nv_ref, h_out, c_out):
    Fs = h0_ref.shape[1]
    T = g1_ref.shape[0]

    wgh = wgh_ref[...]          # (F, 4F), resident for all steps
    nv = nv_ref[...]            # (1, F)

    def step(t, carry):
        h, c = carry
        gates = g1_ref[t] + jnp.dot(h, wgh, preferred_element_type=jnp.float32)
        # One wide sigmoid over the contiguous f/i/o slab (3*Fs lanes), then slice.
        fio = jax.nn.sigmoid(gates[:, :3 * Fs])
        f = fio[:, 0 * Fs:1 * Fs]
        i = fio[:, 1 * Fs:2 * Fs]
        o = fio[:, 2 * Fs:3 * Fs]
        Cg = jnp.tanh(gates[:, 3 * Fs:4 * Fs])
        c_new = f * (c * nv) + i * Cg
        h_new = o * jnp.tanh(c_new)
        return h_new, c_new

    h, c = lax.fori_loop(0, T, step, (h0_ref[...], c0_ref[...]), unroll=True)
    h_out[...] = h
    c_out[...] = c


def gclstm_recurrence(g1_seq, h0, c0, wg_h, nv):
    """g1_seq: (T, B, 4F); returns final (Hidden_State, Cell_State)."""
    B, Fs = h0.shape
    out_shapes = (
        jax.ShapeDtypeStruct((B, Fs), jnp.float32),
        jax.ShapeDtypeStruct((B, Fs), jnp.float32),
    )
    # Gridless call: every operand (g1_seq ~ T*B*4F f32, weights, state) lives in VMEM
    # for the whole kernel; the time loop is fully unrolled inside the body.
    return pl.pallas_call(
        recur_kernel,
        out_shape=out_shapes,
    )(g1_seq, h0, c0, wg_h, nv)


# ---------------------------------------------------------------------------
# Wrappers mirroring GCLSTM_module.forward / .loop
# ---------------------------------------------------------------------------
def gclstm_loop(xs, h0, c0, params):
    """Run T timesteps. xs: (T, B, F). Returns (Hidden_State, Cell_State, gc_seq)."""
    w_all, wg_gc, wg_h, b_gates, nv = params
    T, B, Fs = xs.shape
    KF = w_all.shape[1]

    gc_flat, g1_flat = gclstm_project(xs.reshape(T * B, Fs), w_all, wg_gc, b_gates)
    g1_seq = g1_flat.reshape(T, B, 4 * Fs)

    h_fin, c_fin = gclstm_recurrence(g1_seq, h0, c0, wg_h, nv)
    gc_seq = gc_flat.reshape(T, B, KF)
    return h_fin, c_fin, gc_seq


def gclstm_forward(x, h, c, params):
    """Single-step forward (GCLSTM_module.forward semantics)."""
    h_new, c_new, gc_seq = gclstm_loop(x[None], h, c, params)
    return h_new, c_new, gc_seq[0]


# ---------------------------------------------------------------------------
# Parameter construction mirroring GCLSTM_module.__init__, pre-packed into the
# kernel-friendly fused layout.
# ---------------------------------------------------------------------------
def build_params(key, K, Fs):
    keys = jax.random.split(key, 16)

    # Random non-negative adjacency, then D^-1 A normalization (sum over dim 0).
    A = jax.random.uniform(keys[0], (Fs, Fs), jnp.float32, 0.1, 1.0)
    d_inv = 1.0 / jnp.sum(A, axis=0)
    norm_A = jnp.diag(d_inv) @ A

    A_list = []
    A_temp = jnp.eye(Fs, dtype=jnp.float32)
    for _ in range(K):
        A_temp = jnp.minimum(A_temp @ norm_A, 1.0)   # Clamp_A=True (max=1.0)
        A_list.append(A_temp)

    # FilterLinear: weight (F,F) masked by A_list[i]; y_i = x @ (A_i * W_i)^T.
    # Fuse all K hops into one (F, K*F) matrix so gc = x @ W_all == concat_i(y_i).
    stdv = 1.0 / math.sqrt(Fs)
    gc_w = []
    for i in range(K):
        W = jax.random.uniform(keys[1 + i], (Fs, Fs), jnp.float32, -stdv, stdv)
        gc_w.append((A_list[i] * W).T)
    gc_w = jnp.stack(gc_w, axis=0)                               # (K, F, F)
    w_all = jnp.transpose(gc_w, (1, 0, 2)).reshape(Fs, K * Fs)   # (F, K*F)

    # fl / il / ol / Cl : Linear((K+1)*F -> F), fused and split into [gc | h] parts.
    in_dim = (K + 1) * Fs
    stdv_l = 1.0 / math.sqrt(in_dim)
    Ws, bs = [], []
    for j in range(4):
        W = jax.random.uniform(keys[5 + j], (Fs, in_dim), jnp.float32,
                               -stdv_l, stdv_l)
        b = jax.random.uniform(keys[9 + j], (Fs,), jnp.float32,
                               -stdv_l, stdv_l)
        Ws.append(W.T)                                  # (in_dim, F)
        bs.append(b)
    w_gates = jnp.concatenate(Ws, axis=1)               # (in_dim, 4F)
    b_gates = jnp.concatenate(bs)[None, :]              # (1, 4F)
    wg_gc = w_gates[:K * Fs, :]                         # (K*F, 4F)
    wg_h = w_gates[K * Fs:, :]                          # (F,   4F)

    # Hoisted constant: nv = A_list[-1] @ Neighbor_weight  (torch.mv).
    nweight = jax.random.uniform(keys[13], (Fs,), jnp.float32, -stdv, stdv)
    nv = (A_list[-1] @ nweight)[None, :]                # (1, F)

    return w_all, wg_gc, wg_h, b_gates, nv


# ---------------------------------------------------------------------------
# Pure-JAX reference (concat form, exactly like the torch code).
# ---------------------------------------------------------------------------
def reference_step(x, h, c, params):
    w_all, wg_gc, wg_h, b_gates, nv = params
    Fs = x.shape[1]
    gc = x @ w_all
    combined = jnp.concatenate([gc, h], axis=1)
    w_gates = jnp.concatenate([wg_gc, wg_h], axis=0)
    gates = combined @ w_gates + b_gates
    f = jax.nn.sigmoid(gates[:, 0 * Fs:1 * Fs])
    i = jax.nn.sigmoid(gates[:, 1 * Fs:2 * Fs])
    o = jax.nn.sigmoid(gates[:, 2 * Fs:3 * Fs])
    Cg = jnp.tanh(gates[:, 3 * Fs:4 * Fs])
    c_new = f * (c * nv) + i * Cg
    h_new = o * jnp.tanh(c_new)
    return h_new, c_new, gc


if __name__ == "__main__":
    K = 3
    feature_size = 128   # = hidden_size (number of graph nodes)
    batch = 8
    T = 6                # timesteps: projections batched, recurrence in one kernel

    key = jax.random.PRNGKey(0)
    k_par, k_x, k_h, k_c = jax.random.split(key, 4)

    params = build_params(k_par, K, feature_size)

    xs = jax.random.normal(k_x, (T, batch, feature_size), jnp.float32)
    h0 = jax.random.normal(k_h, (batch, feature_size), jnp.float32)
    c0 = jax.random.normal(k_c, (batch, feature_size), jnp.float32)

    # --- single-step forward (module.forward semantics) ---
    h1, c1, gc1 = jax.block_until_ready(gclstm_forward(xs[0], h0, c0, params))
    h1_r, c1_r, gc1_r = reference_step(xs[0], h0, c0, params)
    assert jnp.allclose(h1, h1_r, atol=1e-4, rtol=1e-4)
    assert jnp.allclose(c1, c1_r, atol=1e-4, rtol=1e-4)
    assert jnp.allclose(gc1, gc1_r, atol=1e-4, rtol=1e-4)

    # --- full recurrence (module.loop semantics) ---
    h_fin, c_fin, gc_seq = jax.block_until_ready(gclstm_loop(xs, h0, c0, params))
    h_r, c_r = h0, c0
    gc_r_all = []
    for t in range(T):
        h_r, c_r, gc_r = reference_step(xs[t], h_r, c_r, params)
        gc_r_all.append(gc_r)
    gc_r_all = jnp.stack(gc_r_all, axis=0)
    assert jnp.allclose(h_fin, h_r, atol=1e-4, rtol=1e-4)
    assert jnp.allclose(c_fin, c_r, atol=1e-4, rtol=1e-4)
    assert jnp.allclose(gc_seq, gc_r_all, atol=1e-4, rtol=1e-4)

    print("KERNEL_OK")
</pallas_src>

<mosaic_0001>
module attributes {stable_mosaic.version = 11 : i64} {
  func.func @proj_kernel(%arg0: i32, %arg1: memref<8x128xf32, #tpu.memory_space<vmem>>, %arg2: memref<128x384xf32, #tpu.memory_space<vmem>>, %arg3: memref<384x512xf32, #tpu.memory_space<vmem>>, %arg4: memref<1x512xf32, #tpu.memory_space<vmem>>, %arg5: memref<8x384xf32, #tpu.memory_space<vmem>>, %arg6: memref<8x512xf32, #tpu.memory_space<vmem>>) attributes {dimension_semantics = [#tpu.dimension_semantics<parallel>], iteration_bounds = array<i64: 1>, scalar_prefetch = 0 : i64, scratch_operands = 0 : i64, tpu.core_type = #tpu.core_type<tc>, window_params = [{transform_indices = @transform_0, window_bounds = array<i64: 8, 128>}, {pipeline_mode = #tpu.pipeline_mode<synchronous>, transform_indices = @transform_1, window_bounds = array<i64: 128, 384>}, {pipeline_mode = #tpu.pipeline_mode<synchronous>, transform_indices = @transform_2, window_bounds = array<i64: 384, 512>}, {pipeline_mode = #tpu.pipeline_mode<synchronous>, transform_indices = @transform_3, window_bounds = array<i64: 1, 512>}, {transform_indices = @transform_4, window_bounds = array<i64: 8, 384>}, {transform_indices = @transform_5, window_bounds = array<i64: 8, 512>}]} {
    %c0 = arith.constant 0 : index
    %c0_0 = arith.constant 0 : index
    %0 = vector.load %arg1[%c0, %c0_0] : memref<8x128xf32, #tpu.memory_space<vmem>>, vector<8x128xf32>
    %c0_1 = arith.constant 0 : index
    %c0_2 = arith.constant 0 : index
    %1 = vector.load %arg2[%c0_1, %c0_2] : memref<128x384xf32, #tpu.memory_space<vmem>>, vector<128x384xf32>
    %cst = arith.constant dense<0.000000e+00> : vector<8x384xf32>
    %2 = tpu.matmul %0, %1, %cst {dimension_numbers = #tpu.dot_dimension_numbers<[1], [0], [0], [1], [0, 0, 1, 1], [], []>} : vector<8x128xf32>, vector<128x384xf32>, vector<8x384xf32> -> vector<8x384xf32>
    %c0_3 = arith.constant 0 : index
    %c0_4 = arith.constant 0 : index
    %3 = vector.load %arg5[%c0_3, %c0_4] : memref<8x384xf32, #tpu.memory_space<vmem>>, vector<8x384xf32>
    tpu.vector_store %arg5[%c0_3, %c0_4], %2 {strides = array<i32>} : memref<8x384xf32, #tpu.memory_space<vmem>>, vector<8x384xf32>,
    %c0_5 = arith.constant 0 : index
    %c0_6 = arith.constant 0 : index
    %4 = vector.load %arg3[%c0_5, %c0_6] : memref<384x512xf32, #tpu.memory_space<vmem>>, vector<384x512xf32>
    %cst_7 = arith.constant dense<0.000000e+00> : vector<8x512xf32>
    %5 = tpu.matmul %2, %4, %cst_7 {dimension_numbers = #tpu.dot_dimension_numbers<[1], [0], [0], [1], [0, 0, 1, 1], [], []>} : vector<8x384xf32>, vector<384x512xf32>, vector<8x512xf32> -> vector<8x512xf32>
    %c0_8 = arith.constant 0 : index
    %c0_9 = arith.constant 0 : index
    %6 = vector.load %arg4[%c0_8, %c0_9] : memref<1x512xf32, #tpu.memory_space<vmem>>, vector<1x512xf32>
    %7 = vector.broadcast %6 : vector<1x512xf32> to vector<8x512xf32>
    %8 = arith.addf %5, %7 : vector<8x512xf32>
    %c0_10 = arith.constant 0 : index
    %c0_11 = arith.constant 0 : index
    %9 = vector.load %arg6[%c0_10, %c0_11] : memref<8x512xf32, #tpu.memory_space<vmem>>, vector<8x512xf32>
    tpu.vector_store %arg6[%c0_10, %c0_11], %8 {strides = array<i32>} : memref<8x512xf32, #tpu.memory_space<vmem>>, vector<8x512xf32>,
    return
  }
  func.func @transform_0(%arg0: i32) -> (i32, i32) {
    %c0_i32 = arith.constant 0 : i32
    %c0_i32_0 = arith.constant 0 : i32
    return %arg0, %c0_i32 : i32, i32
  }
  func.func @transform_1(%arg0: i32) -> (i32, i32) {
    %c0_i32 = arith.constant 0 : i32
    %c0_i32_0 = arith.constant 0 : i32
    %c0_i32_1 = arith.constant 0 : i32
    return %c0_i32, %c0_i32_0 : i32, i32
  }
  func.func @transform_2(%arg0: i32) -> (i32, i32) {
    %c0_i32 = arith.constant 0 : i32
    %c0_i32_0 = arith.constant 0 : i32
    %c0_i32_1 = arith.constant 0 : i32
    return %c0_i32, %c0_i32_0 : i32, i32
  }
  func.func @transform_3(%arg0: i32) -> (i32, i32) {
    %c0_i32 = arith.constant 0 : i32
    %c0_i32_0 = arith.constant 0 : i32
    %c0_i32_1 = arith.constant 0 : i32
    return %c0_i32, %c0_i32_0 : i32, i32
  }
  func.func @transform_4(%arg0: i32) -> (i32, i32) {
    %c0_i32 = arith.constant 0 : i32
    %c0_i32_0 = arith.constant 0 : i32
    return %arg0, %c0_i32 : i32, i32
  }
  func.func @transform_5(%arg0: i32) -> (i32, i32) {
    %c0_i32 = arith.constant 0 : i32
    %c0_i32_0 = arith.constant 0 : i32
    return %arg0, %c0_i32 : i32, i32
  }
}

</mosaic_0001>

<llo_original>
// kernel: tpu_custom_call.1
$region0: #{tpu_custom_call.1}
  #allocation0 [shape = 'u32[]', space=smem, size = 0x4, offset = 0x4, fixed_abs, tag = 'smem constant byte address 0x4 - core index']
  #allocation1 [shape = 'u32[144,128]{1,0:T(1,128)}', space=vmem, size = 0x12000, scoped, tag = 'internal scratch']
  %s0 = inlined_call_operand.hbm [shape: f32[8,128], index: 0, kind: input, shape index: {}]
  %s1 = inlined_call_operand.hbm [shape: f32[128,384], index: 1, kind: input, shape index: {}]
  %s2 = inlined_call_operand.hbm [shape: f32[384,512], index: 2, kind: input, shape index: {}]
  %s3 = inlined_call_operand.vmem [shape: f32[1,512], index: 3, kind: input, shape index: {}]
  %s4 = inlined_call_operand.hbm [shape: f32[8,384], index: 4, kind: output, shape index: {0}]
  %s5 = inlined_call_operand.hbm [shape: f32[8,512], index: 5, kind: output, shape index: {1}]
  %6 = xla_tuple %s4, %s5
  %s7 = sld [smem:[#allocation0]]
  $region46: #{tpu_custom_call.1} parent=0
    _
  %s9 = ssub.s32 1, %s7
  %s10 = scalar_select 0, %s9, %s7
  $region1: #{tpu_custom_call.1} parent=0
    #allocation2 [shape = 'u8[4096]{0}', space=vmem, size = 0x1000, scoped, tag = 'input window, operand 0, single buffered']
    #allocation3 [shape = 's32[1]{0}', space=sflag, size = 0x4, scoped, tag = 'scoped memory for tpu_custom_call.1']
    #allocation4 [shape = 's32[1]{0}', space=sflag, size = 0x4, scoped, tag = 'scoped memory for tpu_custom_call.1']
    #allocation5 [shape = 'u8[196608]{0}', space=vmem, size = 0x30000, scoped, tag = 'input window, operand 1, single buffered']
    #allocation6 [shape = 's32[1]{0}', space=sflag, size = 0x4, scoped, tag = 'scoped memory for tpu_custom_call.1']
    #allocation7 [shape = 'u8[786432]{0}', space=vmem, size = 0xc0000, scoped, tag = 'input window, operand 2, single buffered']
    #allocation8 [shape = 'u8[12288]{0}', space=vmem, size = 0x3000, scoped, tag = 'output window, operand 0, single buffered']
    #allocation9 [shape = 'u8[16384]{0}', space=vmem, size = 0x4000, scoped, tag = 'output window, operand 1, single buffered']
    #allocation10 [shape = 's32[1]{0}', space=sflag, size = 0x4, scoped, tag = 'scoped memory for tpu_custom_call.1']
    %11 = vsyncpa [#allocation3], 0
    %12 = vsyncpa [#allocation6], 0
    %13 = vsyncpa [#allocation4], 0
    %14 = vsyncpa [#allocation10], 0
    // Predicated region
    $region2: #{tpu_custom_call.1} parent=1 // pred_check
      _
    $region3: #{tpu_custom_call.1} parent=1 // pred_check_branch
      %16 = sbr.rel (0) target = $region5
    $region4: #{tpu_custom_call.1} parent=1 // pred_region
      %s18 = ssub.s32 128, 128
      %19 = vsyncadd [#allocation3], %s18
      %s21 = sshll.u32 [#allocation2], 4
      %s22 = int_to_ptr.vmem [resolvable:$true] %s21
      %24 = dma.hbm_to_vmem [thread:$0]  %s0, 128, %s22, [#allocation3]
    $region5: #{tpu_custom_call.1} parent=1 // pred_fallthru
      _
    // Predicated region
    $region6: #{tpu_custom_call.1} parent=1 // pred_check
      _
    $region7: #{tpu_custom_call.1} parent=1 // pred_check_branch
      %26 = sbr.rel (0) target = $region9
    $region8: #{tpu_custom_call.1} parent=1 // pred_region
      %s28 = ssub.s32 6144, 6144
      %29 = vsyncadd [#allocation6], %s28
      %s30 = sshll.u32 [#allocation5], 4
      %s31 = int_to_ptr.vmem [resolvable:$true] %s30
      %36 = dma.hbm_to_vmem [thread:$0]  %s1, 6144, %s31, [#allocation6], 384, 384, 24
    $region9: #{tpu_custom_call.1} parent=1 // pred_fallthru
      _
    // Predicated region
    $region10: #{tpu_custom_call.1} parent=1 // pred_check
      _
    $region11: #{tpu_custom_call.1} parent=1 // pred_check_branch
      %38 = sbr.rel (0) target = $region13
    $region12: #{tpu_custom_call.1} parent=1 // pred_region
      %s40 = ssub.s32 24576, 24576
      %41 = vsyncadd [#allocation6], %s40
      %s42 = sshll.u32 [#allocation7], 4
      %s43 = int_to_ptr.vmem [resolvable:$true] %s42
      %48 = dma.hbm_to_vmem [thread:$0]  %s2, 24576, %s43, [#allocation6], 512, 512, 32
    $region13: #{tpu_custom_call.1} parent=1 // pred_fallthru
      _
    // Predicated region
    $region14: #{tpu_custom_call.1} parent=1 // pred_check
      _
    $region15: #{tpu_custom_call.1} parent=1 // pred_check_branch
      %50 = sbr.rel (0) target = $region17
    $region16: #{tpu_custom_call.1} parent=1 // pred_region
      _
    $region17: #{tpu_custom_call.1} parent=1 // pred_fallthru
      _
    // Predicated region
    $region18: #{tpu_custom_call.1} parent=1 // pred_check
      _
    $region19: #{tpu_custom_call.1} parent=1 // pred_check_branch
      %52 = sbr.rel (0) target = $region21
    $region20: #{tpu_custom_call.1} parent=1 // pred_region
      %53 = dma.done [#allocation3], 128
    $region21: #{tpu_custom_call.1} parent=1 // pred_fallthru
      _
    // Predicated region
    $region22: #{tpu_custom_call.1} parent=1 // pred_check
      _
    $region23: #{tpu_custom_call.1} parent=1 // pred_check_branch
      %55 = sbr.rel (0) target = $region25
    $region24: #{tpu_custom_call.1} parent=1 // pred_region
      %56 = dma.done [#allocation6], 6144
    $region25: #{tpu_custom_call.1} parent=1 // pred_fallthru
      _
    // Predicated region
    $region26: #{tpu_custom_call.1} parent=1 // pred_check
      _
    $region27: #{tpu_custom_call.1} parent=1 // pred_check_branch
      %58 = sbr.rel (0) target = $region29
    $region28: #{tpu_custom_call.1} parent=1 // pred_region
      %59 = dma.done [#allocation6], 24576
    $region29: #{tpu_custom_call.1} parent=1 // pred_fallthru
      _
    %v60 = vld [vmem:[#allocation2] sm:$0xff]
    %v61 = vld [vmem:[#allocation5] sm:$0xff]
    %v62 = vld [vmem:[#allocation5 + $0x8] sm:$0xff]
    %v63 = vld [vmem:[#allocation5 + $0x10] sm:$0xff]
    %v64 = vld [vmem:[#allocation5 + $0x18] sm:$0xff]
    %v65 = vld [vmem:[#allocation5 + $0x20] sm:$0xff]
    %v66 = vld [vmem:[#allocation5 + $0x28] sm:$0xff]
    %v67 = vld [vmem:[#allocation5 + $0x30] sm:$0xff]
    %v68 = vld [vmem:[#allocation5 + $0x38] sm:$0xff]
    %v69 = vld [vmem:[#allocation5 + $0x40] sm:$0xff]
    %v70 = vld [vmem:[#allocation5 + $0x48] sm:$0xff]
    %v71 = vld [vmem:[#allocation5 + $0x50] sm:$0xff]
    %v72 = vld [vmem:[#allocation5 + $0x58] sm:$0xff]
    %v73 = vld [vmem:[#allocation5 + $0x60] sm:$0xff]
    %v74 = vld [vmem:[#allocation5 + $0x68] sm:$0xff]
    %v75 = vld [vmem:[#allocation5 + $0x70] sm:$0xff]
    %v76 = vld [vmem:[#allocation5 + $0x78] sm:$0xff]
    %v77 = vld [vmem:[#allocation5 + $0x80] sm:$0xff]
    %v78 = vld [vmem:[#allocation5 + $0x88] sm:$0xff]
    %v79 = vld [vmem:[#allocation5 + $0x90] sm:$0xff]
    %v80 = vld [vmem:[#allocation5 + $0x98] sm:$0xff]
    %v81 = vld [vmem:[#allocation5 + $0xa0] sm:$0xff]
    %v82 = vld [vmem:[#allocation5 + $0xa8] sm:$0xff]
    %v83 = vld [vmem:[#allocation5 + $0xb0] sm:$0xff]
    %v84 = vld [vmem:[#allocation5 + $0xb8] sm:$0xff]
    %v85 = vld [vmem:[#allocation5 + $0xc0] sm:$0xff]
    %v86 = vld [vmem:[#allocation5 + $0xc8] sm:$0xff]
    %v87 = vld [vmem:[#allocation5 + $0xd0] sm:$0xff]
    %v88 = vld [vmem:[#allocation5 + $0xd8] sm:$0xff]
    %v89 = vld [vmem:[#allocation5 + $0xe0] sm:$0xff]
    %v90 = vld [vmem:[#allocation5 + $0xe8] sm:$0xff]
    %v91 = vld [vmem:[#allocation5 + $0xf0] sm:$0xff]
    %v92 = vld [vmem:[#allocation5 + $0xf8] sm:$0xff]
    %v93 = vld [vmem:[#allocation5 + $0x100] sm:$0xff]
    %v94 = vld [vmem:[#allocation5 + $0x108] sm:$0xff]
    %v95 = vld [vmem:[#allocation5 + $0x110] sm:$0xff]
    %v96 = vld [vmem:[#allocation5 + $0x118] sm:$0xff]
    %v97 = vld [vmem:[#allocation5 + $0x120] sm:$0xff]
    %v98 = vld [vmem:[#allocation5 + $0x128] sm:$0xff]
    %v99 = vld [vmem:[#allocation5 + $0x130] sm:$0xff]
    %v100 = vld [vmem:[#allocation5 + $0x138] sm:$0xff]
    %v101 = vld [vmem:[#allocation5 + $0x140] sm:$0xff]
    %v102 = vld [vmem:[#allocation5 + $0x148] sm:$0xff]
    %v103 = vld [vmem:[#allocation5 + $0x150] sm:$0xff]
    %v104 = vld [vmem:[#allocation5 + $0x158] sm:$0xff]
    %v105 = vld [vmem:[#allocation5 + $0x160] sm:$0xff]
    %v106 = vld [vmem:[#allocation5 + $0x168] sm:$0xff]
    %v107 = vld [vmem:[#allocation5 + $0x170] sm:$0xff]
    %v108 = vld [vmem:[#allocation5 + $0x178] sm:$0xff]
    %109 = vmatprep.subr.mxu0 %v62
    %110 = vmatpush1.msra.mxu0 %v61
    %111 = vmatprep.subr.mxu0 %v65
    %112 = vmatpush1.msra.mxu0 %v64
    %113 = vmatprep.subr.mxu0 %v68
    %114 = vmatpush1.msra.mxu0 %v67
    %115 = vmatprep.subr.mxu0 %v71
    %116 = vmatpush1.msra.mxu0 %v70
    %117 = vmatprep.subr.mxu0 %v74
    %118 = vmatpush1.msra.mxu0 %v73
    %119 = vmatprep.subr.mxu0 %v77
    %120 = vmatpush1.msra.mxu0 %v76
    %121 = vmatprep.subr.mxu0 %v80
    %122 = vmatpush1.msra.mxu0 %v79
    %123 = vmatprep.subr.mxu0 %v83
    %124 = vmatpush1.msra.mxu0 %v82
    %125 = vmatprep.subr.mxu0 %v86
    %126 = vmatpush1.msra.mxu0 %v85
    %127 = vmatprep.subr.mxu0 %v89
    %128 = vmatpush1.msra.mxu0 %v88
    %129 = vmatprep.subr.mxu0 %v92
    %130 = vmatpush1.msra.mxu0 %v91
    %131 = vmatprep.subr.mxu0 %v95
    %132 = vmatpush1.msra.mxu0 %v94
    %133 = vmatprep.subr.mxu0 %v98
    %134 = vmatpush1.msra.mxu0 %v97
    %135 = vmatprep.subr.mxu0 %v101
    %136 = vmatpush1.msra.mxu0 %v100
    %137 = vmatprep.subr.mxu0 %v104
    %138 = vmatpush1.msra.mxu0 %v103
    %139 = vmatprep.subr.mxu0 %v107
    %140 = vmatpush1.msra.mxu0 %v106
    %141 = vmatprep.subr.mxu0 0.0
    %142 = vmatpush1.msra.mxu0 0.0
    %143 = vmatprep.subr.mxu0 0.0
    %144 = vmatpush1.msra.mxu0 0.0
    %145 = vmatprep.subr.mxu0 0.0
    %146 = vmatpush1.msra.mxu0 0.0
    %147 = vmatprep.subr.mxu0 0.0
    %148 = vmatpush1.msra.mxu0 0.0
    %149 = vmatprep.subr.mxu0 0.0
    %150 = vmatpush1.msra.mxu0 0.0
    %151 = vmatprep.subr.mxu0 0.0
    %152 = vmatpush1.msra.mxu0 0.0
    %153 = vmatprep.subr.mxu0 0.0
    %154 = vmatpush1.msra.mxu0 0.0
    %155 = vmatprep.subr.mxu0 0.0
    %156 = vmatpush1.msra.mxu0 0.0
    %157 = vmatprep.subr.mxu0 0.0
    %158 = vmatpush1.msra.mxu0 0.0
    %159 = vmatprep.subr.mxu0 0.0
    %160 = vmatpush1.msra.mxu0 0.0
    %161 = vmatprep.subr.mxu0 0.0
    %162 = vmatpush1.msra.mxu0 0.0
    %163 = vmatprep.subr.mxu0 0.0
    %164 = vmatpush1.msra.mxu0 0.0
    %165 = vmatprep.subr.mxu0 0.0
    %166 = vmatpush1.msra.mxu0 0.0
    %167 = vmatprep.subr.mxu0 0.0
    %168 = vmatpush1.msra.mxu0 0.0
    %169 = vmatprep.subr.mxu0 0.0
    %170 = vmatpush1.msra.mxu0 0.0
    %171 = vmatprep.subr.mxu0 0.0
    %172 = vmatpush1.msra.mxu0 0.0
    %173 = vmatprep.mubr.f32.mxu0 0.0
    %174 = vmatmul.mubr.f32.gmra.mrb[0].mxu0 %v60
    %v175 = vpop.f32.mrb[0].mxu0
    %v176 = vadd.f32 0.0, %v175
    %v177 = vpop.f32.mrb[0].mxu0
    %v178 = vadd.f32 0.0, %v177
    %179 = vdwg.mxu0
    %180 = vmatprep.subr.mxu0 0.0
    %181 = vmatpush1.msra.mxu0 %v63
    %182 = vmatprep.subr.mxu0 0.0
    %183 = vmatpush1.msra.mxu0 %v66
    %184 = vmatprep.subr.mxu0 0.0
    %185 = vmatpush1.msra.mxu0 %v69
    %186 = vmatprep.subr.mxu0 0.0
    %187 = vmatpush1.msra.mxu0 %v72
    %188 = vmatprep.subr.mxu0 0.0
    %189 = vmatpush1.msra.mxu0 %v75
    %190 = vmatprep.subr.mxu0 0.0
    %191 = vmatpush1.msra.mxu0 %v78
    %192 = vmatprep.subr.mxu0 0.0
    %193 = vmatpush1.msra.mxu0 %v81
    %194 = vmatprep.subr.mxu0 0.0
    %195 = vmatpush1.msra.mxu0 %v84
    %196 = vmatprep.subr.mxu0 0.0
    %197 = vmatpush1.msra.mxu0 %v87
    %198 = vmatprep.subr.mxu0 0.0
    %199 = vmatpush1.msra.mxu0 %v90
    %200 = vmatprep.subr.mxu0 0.0
    %201 = vmatpush1.msra.mxu0 %v93
    %202 = vmatprep.subr.mxu0 0.0
    %203 = vmatpush1.msra.mxu0 %v96
    %204 = vmatprep.subr.mxu0 0.0
    %205 = vmatpush1.msra.mxu0 %v99
    %206 = vmatprep.subr.mxu0 0.0
    %207 = vmatpush1.msra.mxu0 %v102
    %208 = vmatprep.subr.mxu0 0.0
    %209 = vmatpush1.msra.mxu0 %v105
    %210 = vmatprep.subr.mxu0 0.0
    %211 = vmatpush1.msra.mxu0 %v108
    %212 = vmatprep.subr.mxu0 0.0
    %213 = vmatpush1.msra.mxu0 0.0
    %214 = vmatprep.subr.mxu0 0.0
    %215 = vmatpush1.msra.mxu0 0.0
    %216 = vmatprep.subr.mxu0 0.0
    %217 = vmatpush1.msra.mxu0 0.0
    %218 = vmatprep.subr.mxu0 0.0
    %219 = vmatpush1.msra.mxu0 0.0
    %220 = vmatprep.subr.mxu0 0.0
    %221 = vmatpush1.msra.mxu0 0.0
    %222 = vmatprep.subr.mxu0 0.0
    %223 = vmatpush1.msra.mxu0 0.0
    %224 = vmatprep.subr.mxu0 0.0
    %225 = vmatpush1.msra.mxu0 0.0
    %226 = vmatprep.subr.mxu0 0.0
    %227 = vmatpush1.msra.mxu0 0.0
    %228 = vmatprep.subr.mxu0 0.0
    %229 = vmatpush1.msra.mxu0 0.0
    %230 = vmatprep.subr.mxu0 0.0
    %231 = vmatpush1.msra.mxu0 0.0
    %232 = vmatprep.subr.mxu0 0.0
    %233 = vmatpush1.msra.mxu0 0.0
    %234 = vmatprep.subr.mxu0 0.0
    %235 = vmatpush1.msra.mxu0 0.0
    %236 = vmatprep.subr.mxu0 0.0
    %237 = vmatpush1.msra.mxu0 0.0
    %238 = vmatprep.subr.mxu0 0.0
    %239 = vmatpush1.msra.mxu0 0.0
    %240 = vmatprep.subr.mxu0 0.0
    %241 = vmatpush1.msra.mxu0 0.0
    %242 = vmatprep.subr.mxu0 0.0
    %243 = vmatpush1.msra.mxu0 0.0
    %244 = vmatprep.mubr.f32.mxu0 0.0
    %245 = vmatmul.mubr.f32.gmra.mrb[0].mxu0 %v60
    %v246 = vpop.f32.mrb[0].mxu0
    %v247 = vadd.f32 0.0, %v246
    %v248 = vpop.f32.mrb[0].mxu0
    %249 = vdwg.mxu0
    %250 = vst [vmem:[#allocation8] sm:$0xff] %v176
    %251 = vst [vmem:[#allocation8 + $0x8] sm:$0xff] %v178
    %252 = vst [vmem:[#allocation8 + $0x10] sm:$0xff] %v247
    %v253 = vld [vmem:[#allocation7] sm:$0xff]
    %v254 = vld [vmem:[#allocation7 + $0x8] sm:$0xff]
    %v255 = vld [vmem:[#allocation7 + $0x10] sm:$0xff]
    %v256 = vld [vmem:[#allocation7 + $0x18] sm:$0xff]
    %v257 = vld [vmem:[#allocation7 + $0x20] sm:$0xff]
    %v258 = vld [vmem:[#allocation7 + $0x28] sm:$0xff]
    %v259 = vld [vmem:[#allocation7 + $0x30] sm:$0xff]
    %v260 = vld [vmem:[#allocation7 + $0x38] sm:$0xff]
    %v261 = vld [vmem:[#allocation7 + $0x40] sm:$0xff]
    %v262 = vld [vmem:[#allocation7 + $0x48] sm:$0xff]
    %v263 = vld [vmem:[#allocation7 + $0x50] sm:$0xff]
    %v264 = vld [vmem:[#allocation7 + $0x58] sm:$0xff]
    %v265 = vld [vmem:[#allocation7 + $0x60] sm:$0xff]
    %v266 = vld [vmem:[#allocation7 + $0x68] sm:$0xff]
    %v267 = vld [vmem:[#allocation7 + $0x70] sm:$0xff]
    %v268 = vld [vmem:[#allocation7 + $0x78] sm:$0xff]
    %v269 = vld [vmem:[#allocation7 + $0x80] sm:$0xff]
    %v270 = vld [vmem:[#allocation7 + $0x88] sm:$0xff]
    %v271 = vld [vmem:[#allocation7 + $0x90] sm:$0xff]
    %v272 = vld [vmem:[#allocation7 + $0x98] sm:$0xff]
    %v273 = vld [vmem:[#allocation7 + $0xa0] sm:$0xff]
    %v274 = vld [vmem:[#allocation7 + $0xa8] sm:$0xff]
    %v275 = vld [vmem:[#allocation7 + $0xb0] sm:$0xff]
    %v276 = vld [vmem:[#allocation7 + $0xb8] sm:$0xff]
    %v277 = vld [vmem:[#allocation7 + $0xc0] sm:$0xff]
    %v278 = vld [vmem:[#allocation7 + $0xc8] sm:$0xff]
    %v279 = vld [vmem:[#allocation7 + $0xd0] sm:$0xff]
    %v280 = vld [vmem:[#allocation7 + $0xd8] sm:$0xff]
    %v281 = vld [vmem:[#allocation7 + $0xe0] sm:$0xff]
    %v282 = vld [vmem:[#allocation7 + $0xe8] sm:$0xff]
    %v283 = vld [vmem:[#allocation7 + $0xf0] sm:$0xff]
    %v284 = vld [vmem:[#allocation7 + $0xf8] sm:$0xff]
    %v285 = vld [vmem:[#allocation7 + $0x100] sm:$0xff]
    %v286 = vld [vmem:[#allocation7 + $0x108] sm:$0xff]
    %v287 = vld [vmem:[#allocation7 + $0x110] sm:$0xff]
    %v288 = vld [vmem:[#allocation7 + $0x118] sm:$0xff]
    %v289 = vld [vmem:[#allocation7 + $0x120] sm:$0xff]
    %v290 = vld [vmem:[#allocation7 + $0x128] sm:$0xff]
    %v291 = vld [vmem:[#allocation7 + $0x130] sm:$0xff]
    %v292 = vld [vmem:[#allocation7 + $0x138] sm:$0xff]
    %v293 = vld [vmem:[#allocation7 + $0x140] sm:$0xff]
    %v294 = vld [vmem:[#allocation7 + $0x148] sm:$0xff]
    %v295 = vld [vmem:[#allocation7 + $0x150] sm:$0xff]
    %v296 = vld [vmem:[#allocation7 + $0x158] sm:$0xff]
    %v297 = vld [vmem:[#allocation7 + $0x160] sm:$0xff]
    %v298 = vld [vmem:[#allocation7 + $0x168] sm:$0xff]
    %v299 = vld [vmem:[#allocation7 + $0x170] sm:$0xff]
    %v300 = vld [vmem:[#allocation7 + $0x178] sm:$0xff]
    %v301 = vld [vmem:[#allocation7 + $0x180] sm:$0xff]
    %v302 = vld [vmem:[#allocation7 + $0x188] sm:$0xff]
    %v303 = vld [vmem:[#allocation7 + $0x190] sm:$0xff]
    %v304 = vld [vmem:[#allocation7 + $0x198] sm:$0xff]
    %v305 = vld [vmem:[#allocation7 + $0x1a0] sm:$0xff]
    %v306 = vld [vmem:[#allocation7 + $0x1a8] sm:$0xff]
    %v307 = vld [vmem:[#allocation7 + $0x1b0] sm:$0xff]
    %v308 = vld [vmem:[#allocation7 + $0x1b8] sm:$0xff]
    %v309 = vld [vmem:[#allocation7 + $0x1c0] sm:$0xff]
    %v310 = vld [vmem:[#allocation7 + $0x1c8] sm:$0xff]
    %v311 = vld [vmem:[#allocation7 + $0x1d0] sm:$0xff]
    %v312 = vld [vmem:[#allocation7 + $0x1d8] sm:$0xff]
    %v313 = vld [vmem:[#allocation7 + $0x1e0] sm:$0xff]
    %v314 = vld [vmem:[#allocation7 + $0x1e8] sm:$0xff]
    %v315 = vld [vmem:[#allocation7 + $0x1f0] sm:$0xff]
    %v316 = vld [vmem:[#allocation7 + $0x1f8] sm:$0xff]
    %v317 = vld [vmem:[#allocation7 + $0x200] sm:$0xff]
    %v318 = vld [vmem:[#allocation7 + $0x208] sm:$0xff]
    %v319 = vld [vmem:[#allocation7 + $0x210] sm:$0xff]
    %v320 = vld [vmem:[#allocation7 + $0x218] sm:$0xff]
    %v321 = vld [vmem:[#allocation7 + $0x220] sm:$0xff]
    %v322 = vld [vmem:[#allocation7 + $0x228] sm:$0xff]
    %v323 = vld [vmem:[#allocation7 + $0x230] sm:$0xff]
    %v324 = vld [vmem:[#allocation7 + $0x238] sm:$0xff]
    %v325 = vld [vmem:[#allocation7 + $0x240] sm:$0xff]
    %v326 = vld [vmem:[#allocation7 + $0x248] sm:$0xff]
    %v327 = vld [vmem:[#allocation7 + $0x250] sm:$0xff]
    %v328 = vld [vmem:[#allocation7 + $0x258] sm:$0xff]
    %v329 = vld [vmem:[#allocation7 + $0x260] sm:$0xff]
    %v330 = vld [vmem:[#allocation7 + $0x268] sm:$0xff]
    %v331 = vld [vmem:[#allocation7 + $0x270] sm:$0xff]
    %v332 = vld [vmem:[#allocation7 + $0x278] sm:$0xff]
    %v333 = vld [vmem:[#allocation7 + $0x280] sm:$0xff]
    %v334 = vld [vmem:[#allocation7 + $0x288] sm:$0xff]
    %v335 = vld [vmem:[#allocation7 + $0x290] sm:$0xff]
    %v336 = vld [vmem:[#allocation7 + $0x298] sm:$0xff]
    %v337 = vld [vmem:[#allocation7 + $0x2a0] sm:$0xff]
    %v338 = vld [vmem:[#allocation7 + $0x2a8] sm:$0xff]
    %v339 = vld [vmem:[#allocation7 + $0x2b0] sm:$0xff]
    %v340 = vld [vmem:[#allocation7 + $0x2b8] sm:$0xff]
    %v341 = vld [vmem:[#allocation7 + $0x2c0] sm:$0xff]
    %v342 = vld [vmem:[#allocation7 + $0x2c8] sm:$0xff]
    %v343 = vld [vmem:[#allocation7 + $0x2d0] sm:$0xff]
    %v344 = vld [vmem:[#allocation7 + $0x2d8] sm:$0xff]
    %v345 = vld [vmem:[#allocation7 + $0x2e0] sm:$0xff]
    %v346 = vld [vmem:[#allocation7 + $0x2e8] sm:$0xff]
    %v347 = vld [vmem:[#allocation7 + $0x2f0] sm:$0xff]
    %v348 = vld [vmem:[#allocation7 + $0x2f8] sm:$0xff]
    %v349 = vld [vmem:[#allocation7 + $0x300] sm:$0xff]
    %v350 = vld [vmem:[#allocation7 + $0x308] sm:$0xff]
    %v351 = vld [vmem:[#allocation7 + $0x310] sm:$0xff]
    %v352 = vld [vmem:[#allocation7 + $0x318] sm:$0xff]
    %v353 = vld [vmem:[#allocation7 + $0x320] sm:$0xff]
    %v354 = vld [vmem:[#allocation7 + $0x328] sm:$0xff]
    %v355 = vld [vmem:[#allocation7 + $0x330] sm:$0xff]
    %v356 = vld [vmem:[#allocation7 + $0x338] sm:$0xff]
    %v357 = vld [vmem:[#allocation7 + $0x340] sm:$0xff]
    %v358 = vld [vmem:[#allocation7 + $0x348] sm:$0xff]
    %v359 = vld [vmem:[#allocation7 + $0x350] sm:$0xff]
    %v360 = vld [vmem:[#allocation7 + $0x358] sm:$0xff]
    %v361 = vld [vmem:[#allocation7 + $0x360] sm:$0xff]
    %v362 = vld [vmem:[#allocation7 + $0x368] sm:$0xff]
    %v363 = vld [vmem:[#allocation7 + $0x370] sm:$0xff]
    %v364 = vld [vmem:[#allocation7 + $0x378] sm:$0xff]
    %v365 = vld [vmem:[#allocation7 + $0x380] sm:$0xff]
    %v366 = vld [vmem:[#allocation7 + $0x388] sm:$0xff]
    %v367 = vld [vmem:[#allocation7 + $0x390] sm:$0xff]
    %v368 = vld [vmem:[#allocation7 + $0x398] sm:$0xff]
    %v369 = vld [vmem:[#allocation7 + $0x3a0] sm:$0xff]
    %v370 = vld [vmem:[#allocation7 + $0x3a8] sm:$0xff]
    %v371 = vld [vmem:[#allocation7 + $0x3b0] sm:$0xff]
    %v372 = vld [vmem:[#allocation7 + $0x3b8] sm:$0xff]
    %v373 = vld [vmem:[#allocation7 + $0x3c0] sm:$0xff]
    %v374 = vld [vmem:[#allocation7 + $0x3c8] sm:$0xff]
    %v375 = vld [vmem:[#allocation7 + $0x3d0] sm:$0xff]
    %v376 = vld [vmem:[#allocation7 + $0x3d8] sm:$0xff]
    %v377 = vld [vmem:[#allocation7 + $0x3e0] sm:$0xff]
    %v378 = vld [vmem:[#allocation7 + $0x3e8] sm:$0xff]
    %v379 = vld [vmem:[#allocation7 + $0x3f0] sm:$0xff]
    %v380 = vld [vmem:[#allocation7 + $0x3f8] sm:$0xff]
    %v381 = vld [vmem:[#allocation7 + $0x400] sm:$0xff]
    %v382 = vld [vmem:[#allocation7 + $0x408] sm:$0xff]
    %v383 = vld [vmem:[#allocation7 + $0x410] sm:$0xff]
    %v384 = vld [vmem:[#allocation7 + $0x418] sm:$0xff]
    %v385 = vld [vmem:[#allocation7 + $0x420] sm:$0xff]
    %v386 = vld [vmem:[#allocation7 + $0x428] sm:$0xff]
    %v387 = vld [vmem:[#allocation7 + $0x430] sm:$0xff]
    %v388 = vld [vmem:[#allocation7 + $0x438] sm:$0xff]
    %v389 = vld [vmem:[#allocation7 + $0x440] sm:$0xff]
    %v390 = vld [vmem:[#allocation7 + $0x448] sm:$0xff]
    %v391 = vld [vmem:[#allocation7 + $0x450] sm:$0xff]
    %v392 = vld [vmem:[#allocation7 + $0x458] sm:$0xff]
    %v393 = vld [vmem:[#allocation7 + $0x460] sm:$0xff]
    %v394 = vld [vmem:[#allocation7 + $0x468] sm:$0xff]
    %v395 = vld [vmem:[#allocation7 + $0x470] sm:$0xff]
    %v396 = vld [vmem:[#allocation7 + $0x478] sm:$0xff]
    %v397 = vld [vmem:[#allocation7 + $0x480] sm:$0xff]
    %v398 = vld [vmem:[#allocation7 + $0x488] sm:$0xff]
    %v399 = vld [vmem:[#allocation7 + $0x490] sm:$0xff]
    %v400 = vld [vmem:[#allocation7 + $0x498] sm:$0xff]
    %v401 = vld [vmem:[#allocation7 + $0x4a0] sm:$0xff]
    %v402 = vld [vmem:[#allocation7 + $0x4a8] sm:$0xff]
    %v403 = vld [vmem:[#allocation7 + $0x4b0] sm:$0xff]
    %v404 = vld [vmem:[#allocation7 + $0x4b8] sm:$0xff]
    %v405 = vld [vmem:[#allocation7 + $0x4c0] sm:$0xff]
    %v406 = vld [vmem:[#allocation7 + $0x4c8] sm:$0xff]
    %v407 = vld [vmem:[#allocation7 + $0x4d0] sm:$0xff]
    %v408 = vld [vmem:[#allocation7 + $0x4d8] sm:$0xff]
    %v409 = vld [vmem:[#allocation7 + $0x4e0] sm:$0xff]
    %v410 = vld [vmem:[#allocation7 + $0x4e8] sm:$0xff]
    %v411 = vld [vmem:[#allocation7 + $0x4f0] sm:$0xff]
    %v412 = vld [vmem:[#allocation7 + $0x4f8] sm:$0xff]
    %v413 = vld [vmem:[#allocation7 + $0x500] sm:$0xff]
    %v414 = vld [vmem:[#allocation7 + $0x508] sm:$0xff]
    %v415 = vld [vmem:[#allocation7 + $0x510] sm:$0xff]
    %v416 = vld [vmem:[#allocation7 + $0x518] sm:$0xff]
    %v417 = vld [vmem:[#allocation7 + $0x520] sm:$0xff]
    %v418 = vld [vmem:[#allocation7 + $0x528] sm:$0xff]
    %v419 = vld [vmem:[#allocation7 + $0x530] sm:$0xff]
    %v420 = vld [vmem:[#allocation7 + $0x538] sm:$0xff]
    %v421 = vld [vmem:[#allocation7 + $0x540] sm:$0xff]
    %v422 = vld [vmem:[#allocation7 + $0x548] sm:$0xff]
    %v423 = vld [vmem:[#allocation7 + $0x550] sm:$0xff]
    %v424 = vld [vmem:[#allocation7 + $0x558] sm:$0xff]
    %v425 = vld [vmem:[#allocation7 + $0x560] sm:$0xff]
    %v426 = vld [vmem:[#allocation7 + $0x568] sm:$0xff]
    %v427 = vld [vmem:[#allocation7 + $0x570] sm:$0xff]
    %v428 = vld [vmem:[#allocation7 + $0x578] sm:$0xff]
    %v429 = vld [vmem:[#allocation7 + $0x580] sm:$0xff]
    %v430 = vld [vmem:[#allocation7 + $0x588] sm:$0xff]
    %v431 = vld [vmem:[#allocation7 + $0x590] sm:$0xff]
    %v432 = vld [vmem:[#allocation7 + $0x598] sm:$0xff]
    %v433 = vld [vmem:[#allocation7 + $0x5a0] sm:$0xff]
    %v434 = vld [vmem:[#allocation7 + $0x5a8] sm:$0xff]
    %v435 = vld [vmem:[#allocation7 + $0x5b0] sm:$0xff]
    %v436 = vld [vmem:[#allocation7 + $0x5b8] sm:$0xff]
    %v437 = vld [vmem:[#allocation7 + $0x5c0] sm:$0xff]
    %v438 = vld [vmem:[#allocation7 + $0x5c8] sm:$0xff]
    %v439 = vld [vmem:[#allocation7 + $0x5d0] sm:$0xff]
    %v440 = vld [vmem:[#allocation7 + $0x5d8] sm:$0xff]
    %v441 = vld [vmem:[#allocation7 + $0x5e0] sm:$0xff]
    %v442 = vld [vmem:[#allocation7 + $0x5e8] sm:$0xff]
    %v443 = vld [vmem:[#allocation7 + $0x5f0] sm:$0xff]
    %v444 = vld [vmem:[#allocation7 + $0x5f8] sm:$0xff]
    %v445 = vld [vmem:[%s3] sm:$0xf]
    %v447 = vlaneseq
    %v448 = vshrl.u32 %v447, 7
    %v449 = vsub.s32 0, %v448
    %v450 = vrot.slane %v445, %v449
    %v451 = vlaneseq
    %v452 = vshrl.u32 %v451, 7
    %v453 = vsub.s32 1, %v452
    %v454 = vrot.slane %v445, %v453
    %v455 = vlaneseq
    %v456 = vshrl.u32 %v455, 7
    %v457 = vsub.s32 2, %v456
    %v458 = vrot.slane %v445, %v457
    %v459 = vlaneseq
    %v460 = vshrl.u32 %v459, 7
    %v461 = vsub.s32 3, %v460
    %v462 = vrot.slane %v445, %v461
    %467 = vmatprep.subr.mxu0 %v254
    %468 = vmatpush1.msra.mxu0 %v253
    %469 = vmatprep.subr.mxu0 %v258
    %470 = vmatpush1.msra.mxu0 %v257
    %471 = vmatprep.subr.mxu0 %v262
    %472 = vmatpush1.msra.mxu0 %v261
    %473 = vmatprep.subr.mxu0 %v266
    %474 = vmatpush1.msra.mxu0 %v265
    %475 = vmatprep.subr.mxu0 %v270
    %476 = vmatpush1.msra.mxu0 %v269
    %477 = vmatprep.subr.mxu0 %v274
    %478 = vmatpush1.msra.mxu0 %v273
    %479 = vmatprep.subr.mxu0 %v278
    %480 = vmatpush1.msra.mxu0 %v277
    %481 = vmatprep.subr.mxu0 %v282
    %482 = vmatpush1.msra.mxu0 %v281
    %483 = vmatprep.subr.mxu0 %v286
    %484 = vmatpush1.msra.mxu0 %v285
    %485 = vmatprep.subr.mxu0 %v290
    %486 = vmatpush1.msra.mxu0 %v289
    %487 = vmatprep.subr.mxu0 %v294
    %488 = vmatpush1.msra.mxu0 %v293
    %489 = vmatprep.subr.mxu0 %v298
    %490 = vmatpush1.msra.mxu0 %v297
    %491 = vmatprep.subr.mxu0 %v302
    %492 = vmatpush1.msra.mxu0 %v301
    %493 = vmatprep.subr.mxu0 %v306
    %494 = vmatpush1.msra.mxu0 %v305
    %495 = vmatprep.subr.mxu0 %v310
    %496 = vmatpush1.msra.mxu0 %v309
    %497 = vmatprep.subr.mxu0 %v314
    %498 = vmatpush1.msra.mxu0 %v313
    %499 = vmatprep.subr.mxu0 %v318
    %500 = vmatpush1.msra.mxu0 %v317
    %501 = vmatprep.subr.mxu0 %v322
    %502 = vmatpush1.msra.mxu0 %v321
    %503 = vmatprep.subr.mxu0 %v326
    %504 = vmatpush1.msra.mxu0 %v325
    %505 = vmatprep.subr.mxu0 %v330
    %506 = vmatpush1.msra.mxu0 %v329
    %507 = vmatprep.subr.mxu0 %v334
    %508 = vmatpush1.msra.mxu0 %v333
    %509 = vmatprep.subr.mxu0 %v338
    %510 = vmatpush1.msra.mxu0 %v337
    %511 = vmatprep.subr.mxu0 %v342
    %512 = vmatpush1.msra.mxu0 %v341
    %513 = vmatprep.subr.mxu0 %v346
    %514 = vmatpush1.msra.mxu0 %v345
    %515 = vmatprep.subr.mxu0 %v350
    %516 = vmatpush1.msra.mxu0 %v349
    %517 = vmatprep.subr.mxu0 %v354
    %518 = vmatpush1.msra.mxu0 %v353
    %519 = vmatprep.subr.mxu0 %v358
    %520 = vmatpush1.msra.mxu0 %v357
    %521 = vmatprep.subr.mxu0 %v362
    %522 = vmatpush1.msra.mxu0 %v361
    %523 = vmatprep.subr.mxu0 %v366
    %524 = vmatpush1.msra.mxu0 %v365
    %525 = vmatprep.subr.mxu0 %v370
    %526 = vmatpush1.msra.mxu0 %v369
    %527 = vmatprep.subr.mxu0 %v374
    %528 = vmatpush1.msra.mxu0 %v373
    %529 = vmatprep.subr.mxu0 %v378
    %530 = vmatpush1.msra.mxu0 %v377
    %531 = vmatprep.mubr.f32.mxu0 %v178
    %532 = vmatmul.mubr.f32.gmra.mrb[0].mxu0 %v176
    %v533 = vpop.f32.mrb[0].mxu0
    %v534 = vadd.f32 %v450, %v533
    %v535 = vpop.f32.mrb[0].mxu0
    %v536 = vadd.f32 %v454, %v535
    %537 = vdwg.mxu0
    %538 = vmatprep.subr.mxu0 %v382
    %539 = vmatpush1.msra.mxu0 %v381
    %540 = vmatprep.subr.mxu0 %v386
    %541 = vmatpush1.msra.mxu0 %v385
    %542 = vmatprep.subr.mxu0 %v390
    %543 = vmatpush1.msra.mxu0 %v389
    %544 = vmatprep.subr.mxu0 %v394
    %545 = vmatpush1.msra.mxu0 %v393
    %546 = vmatprep.subr.mxu0 %v398
    %547 = vmatpush1.msra.mxu0 %v397
    %548 = vmatprep.subr.mxu0 %v402
    %549 = vmatpush1.msra.mxu0 %v401
    %550 = vmatprep.subr.mxu0 %v406
    %551 = vmatpush1.msra.mxu0 %v405
    %552 = vmatprep.subr.mxu0 %v410
    %553 = vmatpush1.msra.mxu0 %v409
    %554 = vmatprep.subr.mxu0 %v414
    %555 = vmatpush1.msra.mxu0 %v413
    %556 = vmatprep.subr.mxu0 %v418
    %557 = vmatpush1.msra.mxu0 %v417
    %558 = vmatprep.subr.mxu0 %v422
    %559 = vmatpush1.msra.mxu0 %v421
    %560 = vmatprep.subr.mxu0 %v426
    %561 = vmatpush1.msra.mxu0 %v425
    %562 = vmatprep.subr.mxu0 %v430
    %563 = vmatpush1.msra.mxu0 %v429
    %564 = vmatprep.subr.mxu0 %v434
    %565 = vmatpush1.msra.mxu0 %v433
    %566 = vmatprep.subr.mxu0 %v438
    %567 = vmatpush1.msra.mxu0 %v437
    %568 = vmatprep.subr.mxu0 %v442
    %569 = vmatpush1.msra.mxu0 %v441
    %570 = vmatprep.subr.mxu0 0.0
    %571 = vmatpush1.msra.mxu0 0.0
    %572 = vmatprep.subr.mxu0 0.0
    %573 = vmatpush1.msra.mxu0 0.0
    %574 = vmatprep.subr.mxu0 0.0
    %575 = vmatpush1.msra.mxu0 0.0
    %576 = vmatprep.subr.mxu0 0.0
    %577 = vmatpush1.msra.mxu0 0.0
    %578 = vmatprep.subr.mxu0 0.0
    %579 = vmatpush1.msra.mxu0 0.0
    %580 = vmatprep.subr.mxu0 0.0
    %581 = vmatpush1.msra.mxu0 0.0
    %582 = vmatprep.subr.mxu0 0.0
    %583 = vmatpush1.msra.mxu0 0.0
    %584 = vmatprep.subr.mxu0 0.0
    %585 = vmatpush1.msra.mxu0 0.0
    %586 = vmatprep.subr.mxu0 0.0
    %587 = vmatpush1.msra.mxu0 0.0
    %588 = vmatprep.subr.mxu0 0.0
    %589 = vmatpush1.msra.mxu0 0.0
    %590 = vmatprep.subr.mxu0 0.0
    %591 = vmatpush1.msra.mxu0 0.0
    %592 = vmatprep.subr.mxu0 0.0
    %593 = vmatpush1.msra.mxu0 0.0
    %594 = vmatprep.subr.mxu0 0.0
    %595 = vmatpush1.msra.mxu0 0.0
    %596 = vmatprep.subr.mxu0 0.0
    %597 = vmatpush1.msra.mxu0 0.0
    %598 = vmatprep.subr.mxu0 0.0
    %599 = vmatpush1.msra.mxu0 0.0
    %600 = vmatprep.subr.mxu0 0.0
    %601 = vmatpush1.msra.mxu0 0.0
    %602 = vmatprep.mubr.f32.mxu0 0.0
    %603 = vmatmul.mubr.f32.gmra.mrb[0].mxu0 %v247
    %v604 = vpop.f32.mrb[0].mxu0
    %v605 = vadd.f32 %v534, %v604
    %v606 = vpop.f32.mrb[0].mxu0
    %v607 = vadd.f32 %v536, %v606
    %608 = vdwg.mxu0
    %609 = vmatprep.subr.mxu0 %v256
    %610 = vmatpush1.msra.mxu0 %v255
    %611 = vmatprep.subr.mxu0 %v260
    %612 = vmatpush1.msra.mxu0 %v259
    %613 = vmatprep.subr.mxu0 %v264
    %614 = vmatpush1.msra.mxu0 %v263
    %615 = vmatprep.subr.mxu0 %v268
    %616 = vmatpush1.msra.mxu0 %v267
    %617 = vmatprep.subr.mxu0 %v272
    %618 = vmatpush1.msra.mxu0 %v271
    %619 = vmatprep.subr.mxu0 %v276
    %620 = vmatpush1.msra.mxu0 %v275
    %621 = vmatprep.subr.mxu0 %v280
    %622 = vmatpush1.msra.mxu0 %v279
    %623 = vmatprep.subr.mxu0 %v284
    %624 = vmatpush1.msra.mxu0 %v283
    %625 = vmatprep.subr.mxu0 %v288
    %626 = vmatpush1.msra.mxu0 %v287
    %627 = vmatprep.subr.mxu0 %v292
    %628 = vmatpush1.msra.mxu0 %v291
    %629 = vmatprep.subr.mxu0 %v296
    %630 = vmatpush1.msra.mxu0 %v295
    %631 = vmatprep.subr.mxu0 %v300
    %632 = vmatpush1.msra.mxu0 %v299
    %633 = vmatprep.subr.mxu0 %v304
    %634 = vmatpush1.msra.mxu0 %v303
    %635 = vmatprep.subr.mxu0 %v308
    %636 = vmatpush1.msra.mxu0 %v307
    %637 = vmatprep.subr.mxu0 %v312
    %638 = vmatpush1.msra.mxu0 %v311
    %639 = vmatprep.subr.mxu0 %v316
    %640 = vmatpush1.msra.mxu0 %v315
    %641 = vmatprep.subr.mxu0 %v320
    %642 = vmatpush1.msra.mxu0 %v319
    %643 = vmatprep.subr.mxu0 %v324
    %644 = vmatpush1.msra.mxu0 %v323
    %645 = vmatprep.subr.mxu0 %v328
    %646 = vmatpush1.msra.mxu0 %v327
    %647 = vmatprep.subr.mxu0 %v332
    %648 = vmatpush1.msra.mxu0 %v331
    %649 = vmatprep.subr.mxu0 %v336
    %650 = vmatpush1.msra.mxu0 %v335
    %651 = vmatprep.subr.mxu0 %v340
    %652 = vmatpush1.msra.mxu0 %v339
    %653 = vmatprep.subr.mxu0 %v344
    %654 = vmatpush1.msra.mxu0 %v343
    %655 = vmatprep.subr.mxu0 %v348
    %656 = vmatpush1.msra.mxu0 %v347
    %657 = vmatprep.subr.mxu0 %v352
    %658 = vmatpush1.msra.mxu0 %v351
    %659 = vmatprep.subr.mxu0 %v356
    %660 = vmatpush1.msra.mxu0 %v355
    %661 = vmatprep.subr.mxu0 %v360
    %662 = vmatpush1.msra.mxu0 %v359
    %663 = vmatprep.subr.mxu0 %v364
    %664 = vmatpush1.msra.mxu0 %v363
    %665 = vmatprep.subr.mxu0 %v368
    %666 = vmatpush1.msra.mxu0 %v367
    %667 = vmatprep.subr.mxu0 %v372
    %668 = vmatpush1.msra.mxu0 %v371
    %669 = vmatprep.subr.mxu0 %v376
    %670 = vmatpush1.msra.mxu0 %v375
    %671 = vmatprep.subr.mxu0 %v380
    %672 = vmatpush1.msra.mxu0 %v379
    %673 = vmatprep.mubr.f32.mxu0 %v178
    %674 = vmatmul.mubr.f32.gmra.mrb[0].mxu0 %v176
    %v675 = vpop.f32.mrb[0].mxu0
    %v676 = vadd.f32 %v458, %v675
    %v677 = vpop.f32.mrb[0].mxu0
    %v678 = vadd.f32 %v462, %v677
    %679 = vdwg.mxu0
    %680 = vmatprep.subr.mxu0 %v384
    %681 = vmatpush1.msra.mxu0 %v383
    %682 = vmatprep.subr.mxu0 %v388
    %683 = vmatpush1.msra.mxu0 %v387
    %684 = vmatprep.subr.mxu0 %v392
    %685 = vmatpush1.msra.mxu0 %v391
    %686 = vmatprep.subr.mxu0 %v396
    %687 = vmatpush1.msra.mxu0 %v395
    %688 = vmatprep.subr.mxu0 %v400
    %689 = vmatpush1.msra.mxu0 %v399
    %690 = vmatprep.subr.mxu0 %v404
    %691 = vmatpush1.msra.mxu0 %v403
    %692 = vmatprep.subr.mxu0 %v408
    %693 = vmatpush1.msra.mxu0 %v407
    %694 = vmatprep.subr.mxu0 %v412
    %695 = vmatpush1.msra.mxu0 %v411
    %696 = vmatprep.subr.mxu0 %v416
    %697 = vmatpush1.msra.mxu0 %v415
    %698 = vmatprep.subr.mxu0 %v420
    %699 = vmatpush1.msra.mxu0 %v419
    %700 = vmatprep.subr.mxu0 %v424
    %701 = vmatpush1.msra.mxu0 %v423
    %702 = vmatprep.subr.mxu0 %v428
    %703 = vmatpush1.msra.mxu0 %v427
    %704 = vmatprep.subr.mxu0 %v432
    %705 = vmatpush1.msra.mxu0 %v431
    %706 = vmatprep.subr.mxu0 %v436
    %707 = vmatpush1.msra.mxu0 %v435
    %708 = vmatprep.subr.mxu0 %v440
    %709 = vmatpush1.msra.mxu0 %v439
    %710 = vmatprep.subr.mxu0 %v444
    %711 = vmatpush1.msra.mxu0 %v443
    %712 = vmatprep.subr.mxu0 0.0
    %713 = vmatpush1.msra.mxu0 0.0
    %714 = vmatprep.subr.mxu0 0.0
    %715 = vmatpush1.msra.mxu0 0.0
    %716 = vmatprep.subr.mxu0 0.0
    %717 = vmatpush1.msra.mxu0 0.0
    %718 = vmatprep.subr.mxu0 0.0
    %719 = vmatpush1.msra.mxu0 0.0
    %720 = vmatprep.subr.mxu0 0.0
    %721 = vmatpush1.msra.mxu0 0.0
    %722 = vmatprep.subr.mxu0 0.0
    %723 = vmatpush1.msra.mxu0 0.0
    %724 = vmatprep.subr.mxu0 0.0
    %725 = vmatpush1.msra.mxu0 0.0
    %726 = vmatprep.subr.mxu0 0.0
    %727 = vmatpush1.msra.mxu0 0.0
    %728 = vmatprep.subr.mxu0 0.0
    %729 = vmatpush1.msra.mxu0 0.0
    %730 = vmatprep.subr.mxu0 0.0
    %731 = vmatpush1.msra.mxu0 0.0
    %732 = vmatprep.subr.mxu0 0.0
    %733 = vmatpush1.msra.mxu0 0.0
    %734 = vmatprep.subr.mxu0 0.0
    %735 = vmatpush1.msra.mxu0 0.0
    %736 = vmatprep.subr.mxu0 0.0
    %737 = vmatpush1.msra.mxu0 0.0
    %738 = vmatprep.subr.mxu0 0.0
    %739 = vmatpush1.msra.mxu0 0.0
    %740 = vmatprep.subr.mxu0 0.0
    %741 = vmatpush1.msra.mxu0 0.0
    %742 = vmatprep.subr.mxu0 0.0
    %743 = vmatpush1.msra.mxu0 0.0
    %744 = vmatprep.mubr.f32.mxu0 0.0
    %745 = vmatmul.mubr.f32.gmra.mrb[0].mxu0 %v247
    %v746 = vpop.f32.mrb[0].mxu0
    %v747 = vadd.f32 %v676, %v746
    %v748 = vpop.f32.mrb[0].mxu0
    %v749 = vadd.f32 %v678, %v748
    %750 = vdwg.mxu0
    %751 = vst [vmem:[#allocation9] sm:$0xff] %v605
    %752 = vst [vmem:[#allocation9 + $0x8] sm:$0xff] %v607
    %753 = vst [vmem:[#allocation9 + $0x10] sm:$0xff] %v747
    %754 = vst [vmem:[#allocation9 + $0x18] sm:$0xff] %v749
    // Predicated region
    $region30: #{tpu_custom_call.1} parent=1 // pred_check
      _
    $region31: #{tpu_custom_call.1} parent=1 // pred_check_branch
      %756 = sbr.rel (0) target = $region33
    $region32: #{tpu_custom_call.1} parent=1 // pred_region
      %s758 = ssub.s32 384, 384
      %759 = vsyncadd [#allocation4], %s758
      %s761 = sshll.u32 [#allocation8], 4
      %s762 = int_to_ptr.vmem [resolvable:$true] %s761
      %764 = dma.vmem_to_hbm [thread:$0]  %s762, 384, %s4, [#allocation4]
    $region33: #{tpu_custom_call.1} parent=1 // pred_fallthru
      _
    // Predicated region
    $region34: #{tpu_custom_call.1} parent=1 // pred_check
      _
    $region35: #{tpu_custom_call.1} parent=1 // pred_check_branch
      %766 = sbr.rel (0) target = $region37
    $region36: #{tpu_custom_call.1} parent=1 // pred_region
      %s768 = ssub.s32 512, 512
      %769 = vsyncadd [#allocation10], %s768
      %s771 = sshll.u32 [#allocation9], 4
      %s772 = int_to_ptr.vmem [resolvable:$true] %s771
      %774 = dma.vmem_to_hbm [thread:$0]  %s772, 512, %s5, [#allocation10]
    $region37: #{tpu_custom_call.1} parent=1 // pred_fallthru
      _
    // Predicated region
    $region38: #{tpu_custom_call.1} parent=1 // pred_check
      _
    $region39: #{tpu_custom_call.1} parent=1 // pred_check_branch
      %776 = sbr.rel (0) target = $region41
    $region40: #{tpu_custom_call.1} parent=1 // pred_region
      %777 = dma.done [#allocation4], 384
    $region41: #{tpu_custom_call.1} parent=1 // pred_fallthru
      _
    // Predicated region
    $region42: #{tpu_custom_call.1} parent=1 // pred_check
      _
    $region43: #{tpu_custom_call.1} parent=1 // pred_check_branch
      %779 = sbr.rel (0) target = $region45
    $region44: #{tpu_custom_call.1} parent=1 // pred_region
      %780 = dma.done [#allocation10], 512
    $region45: #{tpu_custom_call.1} parent=1 // pred_fallthru
      _
    %781 = vsyncpa [#allocation3], 1
    %782 = vsyncpa [#allocation6], 1
    %783 = vsyncpa [#allocation4], 1
    %784 = vsyncpa [#allocation10], 1

</llo_original>
